<compile_context>
chip_gen: v7x
topology: tpu7x:2x2x1
jax: 0.10.0
libtpu: 0.0.40
codegen_flags: <defaults>
</compile_context>

<pallas_src>
import math
from functools import partial

import jax
import jax.numpy as jnp
from jax.experimental import pallas as pl
from jax.experimental.pallas import tpu as pltpu


# ----------------------------------------------------------------------------
# VMEM budget (re-derived per generation: 64 MiB/TC on v7x, 128 MiB v5e/v6e)
# ----------------------------------------------------------------------------
def _vmem_limits():
    try:
        cap = int(pltpu.get_tpu_info().vmem_capacity_bytes)
    except Exception:
        cap = 64 * 1024 * 1024  # conservative fallback (fits every generation)
    return cap, int(cap * 0.8)


_VMEM_CAPACITY, _VMEM_LIMIT = _vmem_limits()
_TILE_BUDGET = int(_VMEM_LIMIT * 0.6)   # headroom for compiler-internal scratch


def _sublane_tiles(dim, max_tile):
    """Descending tile candidates for a sublane (2nd-last) dim: multiples of 8
    that evenly divide `dim`, else the full dim."""
    cands = [c for c in range(min(max_tile, dim) // 8 * 8, 0, -8) if dim % c == 0]
    return cands if cands else [dim]


def _lane_tiles(dim, max_tile):
    """Descending tile candidates for a lane (last) dim: multiples of 128 that
    evenly divide `dim`, else the full dim (lane-dense either way)."""
    cands = [c for c in range(min(max_tile, dim) // 128 * 128, 0, -128)
             if dim % c == 0]
    return cands if cands else [dim]


# ----------------------------------------------------------------------------
# Tiled linear kernel:  y = x @ W + b   (W stored (Din, Dout))
# grid = (M_tiles, N_tiles, K_tiles); reduction axis (K) last.
# ----------------------------------------------------------------------------
def _linear_kernel_inplace(x_ref, w_ref, b_ref, o_ref, *, mxu_dtype):
    # f32 output: accumulate directly into the resident output block
    # (saves a full (tm, tn) f32 acc buffer of VMEM).
    k = pl.program_id(2)

    @pl.when(k == 0)
    def _():
        o_ref[...] = jnp.broadcast_to(b_ref[...], o_ref.shape).astype(o_ref.dtype)

    o_ref[...] += jnp.dot(x_ref[...].astype(mxu_dtype),
                          w_ref[...].astype(mxu_dtype),
                          preferred_element_type=jnp.float32)


def _linear_kernel_acc(x_ref, w_ref, b_ref, o_ref, acc_ref, *, mxu_dtype):
    # Non-f32 output: keep an f32 accumulator scratch, finalize on last K step.
    k = pl.program_id(2)

    @pl.when(k == 0)
    def _():
        acc_ref[...] = jnp.zeros_like(acc_ref)

    acc_ref[...] += jnp.dot(x_ref[...].astype(mxu_dtype),
                            w_ref[...].astype(mxu_dtype),
                            preferred_element_type=jnp.float32)

    @pl.when(k == pl.num_programs(2) - 1)
    def _():
        o_ref[...] = (acc_ref[...] + b_ref[...]).astype(o_ref.dtype)


def _pick_linear_tiles(M, Din, Dout, itemsize, needs_acc):
    for tm in _sublane_tiles(M, 512):
        for tn in _lane_tiles(Dout, 1024):
            for tk in _lane_tiles(Din, 1024):
                vmem = 2 * (tm * tk + tk * tn + tn) * itemsize   # dbl-buffered in
                vmem += 2 * tm * tn * itemsize                   # dbl-buffered out
                if needs_acc:
                    vmem += tm * tn * 4                          # f32 acc scratch
                if vmem <= _TILE_BUDGET:
                    return tm, tn, tk
    return (_sublane_tiles(M, 512)[-1],
            _lane_tiles(Dout, 1024)[-1],
            _lane_tiles(Din, 1024)[-1])


def pallas_linear(x2d, w, b2d, *, mxu_dtype=None):
    """x2d: (M, Din); w: (Din, Dout); b2d: (1, Dout)."""
    M, Din = x2d.shape
    Dout = w.shape[1]
    out_dtype = x2d.dtype
    mxu_dtype = mxu_dtype if mxu_dtype is not None else out_dtype
    needs_acc = jnp.dtype(out_dtype) != jnp.dtype(jnp.float32)

    tm, tn, tk = _pick_linear_tiles(M, Din, Dout, jnp.dtype(out_dtype).itemsize,
                                    needs_acc)
    grid = (M // tm, Dout // tn, Din // tk)

    kernel = partial(_linear_kernel_acc if needs_acc else _linear_kernel_inplace,
                     mxu_dtype=mxu_dtype)
    scratch = [pltpu.VMEM((tm, tn), jnp.float32)] if needs_acc else []

    return pl.pallas_call(
        kernel,
        out_shape=jax.ShapeDtypeStruct((M, Dout), out_dtype),
        grid=grid,
        in_specs=[
            pl.BlockSpec((tm, tk), lambda i, j, k: (i, k)),
            pl.BlockSpec((tk, tn), lambda i, j, k: (k, j)),
            pl.BlockSpec((1, tn), lambda i, j, k: (0, j)),
        ],
        out_specs=pl.BlockSpec((tm, tn), lambda i, j, k: (i, j)),
        scratch_shapes=scratch,
        compiler_params=pltpu.CompilerParams(
            dimension_semantics=("parallel", "parallel", "arbitrary"),
            vmem_limit_bytes=_VMEM_LIMIT),
    )(x2d, w, b2d)


# ----------------------------------------------------------------------------
# Flash-style attention kernel (default fast path, no weights materialized).
#   q_ref : (tq,  H*Dqk)   one batch element, tq query rows (q pre-scaled)
#   kv_ref: (tkv, H*Dqk + H*Dv)   one KV block of the fused K|V projection
#   o_ref : (tq,  H*Dv)    lane-dense output slab (written on last KV step)
# Heads are static Ref slices of the channel-packed dim; per-head m/l/acc
# live in VMEM scratch -> VMEM is independent of Nkv.
# ----------------------------------------------------------------------------
def _flash_attn_kernel(q_ref, kv_ref, o_ref, m_scr, l_scr, acc_scr, *,
                       num_heads, d_qk, d_v, qk_total, mxu_dtype):
    kvi = pl.program_id(2)

    @pl.when(kvi == 0)
    def _():
        m_scr[...] = jnp.full_like(m_scr, -jnp.inf)
        l_scr[...] = jnp.zeros_like(l_scr)
        acc_scr[...] = jnp.zeros_like(acc_scr)

    for h in range(num_heads):          # static unroll, H is small
        qh = q_ref[:, h * d_qk:(h + 1) * d_qk]                        # (tq, Dqk)
        kh = kv_ref[:, h * d_qk:(h + 1) * d_qk]                       # (tkv, Dqk)
        vh = kv_ref[:, qk_total + h * d_v: qk_total + (h + 1) * d_v]  # (tkv, Dv)

        # QK^T via dot_general contracting last axes.  The 1/sqrt(Dqk) scale
        # is already folded into W_q, so no per-score multiply here.
        s = jax.lax.dot_general(
            qh.astype(mxu_dtype), kh.astype(mxu_dtype),
            (((1,), (1,)), ((), ())),
            preferred_element_type=jnp.float32)                       # (tq, tkv)

        m_prev = m_scr[:, h:h + 1]
        m_new = jnp.maximum(m_prev, jnp.max(s, axis=-1, keepdims=True))
        alpha = jnp.exp(m_prev - m_new)
        p = jnp.exp(s - m_new)
        l_scr[:, h:h + 1] = alpha * l_scr[:, h:h + 1] + jnp.sum(p, axis=-1,
                                                                keepdims=True)
        acc_scr[:, h * d_v:(h + 1) * d_v] = (
            alpha * acc_scr[:, h * d_v:(h + 1) * d_v]
            + jnp.dot(p.astype(mxu_dtype), vh.astype(mxu_dtype),
                      preferred_element_type=jnp.float32))
        m_scr[:, h:h + 1] = m_new

    @pl.when(kvi == pl.num_programs(2) - 1)
    def _():
        for h in range(num_heads):
            inv_l = pl.reciprocal(l_scr[:, h:h + 1], approx=True)     # EUP slot
            acc_scr[:, h * d_v:(h + 1) * d_v] *= inv_l
        # Single full-width lane-dense store.
        o_ref[...] = acc_scr[...].astype(o_ref.dtype)


def _pick_flash_tiles(Nq, Nkv, qk_total, kv_total, v_total, num_heads, d_v,
                      itemsize):
    for tq in _sublane_tiles(Nq, 512):
        for tkv in _sublane_tiles(Nkv, 1024):
            vmem = 2 * (tq * qk_total + tkv * kv_total) * itemsize   # dbl-buf in
            vmem += 2 * tq * v_total * itemsize                      # dbl-buf out
            vmem += tq * (2 * num_heads + num_heads * d_v) * 4       # m/l/acc f32
            if vmem <= _TILE_BUDGET:
                return tq, tkv
    return _sublane_tiles(Nq, 512)[-1], _sublane_tiles(Nkv, 1024)[-1]


def _flash_attend(qp, kvp, *, num_heads, d_qk, d_v, mxu_dtype):
    B, Nq, qk_total = qp.shape
    _, Nkv, kv_total = kvp.shape
    v_total = kv_total - qk_total
    itemsize = jnp.dtype(qp.dtype).itemsize

    tq, tkv = _pick_flash_tiles(Nq, Nkv, qk_total, kv_total, v_total,
                                num_heads, d_v, itemsize)
    grid = (B, Nq // tq, Nkv // tkv)

    kernel = partial(_flash_attn_kernel, num_heads=num_heads, d_qk=d_qk,
                     d_v=d_v, qk_total=qk_total, mxu_dtype=mxu_dtype)

    return pl.pallas_call(
        kernel,
        out_shape=jax.ShapeDtypeStruct((B, Nq, v_total), qp.dtype),
        grid=grid,
        in_specs=[
            pl.BlockSpec((None, tq, qk_total), lambda b, i, j: (b, i, 0)),
            pl.BlockSpec((None, tkv, kv_total), lambda b, i, j: (b, j, 0)),
        ],
        out_specs=pl.BlockSpec((None, tq, v_total), lambda b, i, j: (b, i, 0)),
        scratch_shapes=[
            pltpu.VMEM((tq, num_heads), jnp.float32),            # m
            pltpu.VMEM((tq, num_heads), jnp.float32),            # l
            pltpu.VMEM((tq, num_heads * d_v), jnp.float32),      # acc
        ],
        compiler_params=pltpu.CompilerParams(
            dimension_semantics=("parallel", "parallel", "arbitrary"),
            vmem_limit_bytes=_VMEM_LIMIT),
    )(qp, kvp)


# ----------------------------------------------------------------------------
# Weights-returning attention kernel (opt-in path, full Nkv per query tile).
# Exact-reciprocal softmax; weights written in f32.
# ----------------------------------------------------------------------------
def _attn_weights_kernel(q_ref, kv_ref, o_ref, w_ref, acc_scr, *,
                         num_heads, d_qk, d_v, qk_total, mxu_dtype):
    for h in range(num_heads):
        qh = q_ref[:, h * d_qk:(h + 1) * d_qk]
        kh = kv_ref[:, h * d_qk:(h + 1) * d_qk]
        vh = kv_ref[:, qk_total + h * d_v: qk_total + (h + 1) * d_v]

        s = jax.lax.dot_general(
            qh.astype(mxu_dtype), kh.astype(mxu_dtype),
            (((1,), (1,)), ((), ())),
            preferred_element_type=jnp.float32)                   # (tq, Nkv)

        m = jnp.max(s, axis=-1, keepdims=True)
        e = jnp.exp(s - m)
        l = jnp.sum(e, axis=-1, keepdims=True)
        p = e / l                       # exact softmax for the returned weights
        w_ref[h] = p.astype(w_ref.dtype)

        acc_scr[:, h * d_v:(h + 1) * d_v] = jnp.dot(
            p.astype(mxu_dtype), vh.astype(mxu_dtype),
            preferred_element_type=jnp.float32)

    o_ref[...] = acc_scr[...].astype(o_ref.dtype)


def _weights_attend(qp, kvp, *, num_heads, d_qk, d_v, mxu_dtype):
    B, Nq, qk_total = qp.shape
    _, Nkv, kv_total = kvp.shape
    v_total = kv_total - qk_total
    itemsize = jnp.dtype(qp.dtype).itemsize

    tq = _sublane_tiles(Nq, 512)[-1]
    for cand in _sublane_tiles(Nq, 512):
        vmem = (2 * (cand * qk_total + Nkv * kv_total) * itemsize
                + 2 * cand * v_total * itemsize
                + 2 * num_heads * cand * Nkv * 4      # f32 weights out, dbl-buf
                + cand * v_total * 4)                 # acc scratch
        if vmem <= _TILE_BUDGET:
            tq = cand
            break
    grid = (B, Nq // tq)

    kernel = partial(_attn_weights_kernel, num_heads=num_heads, d_qk=d_qk,
                     d_v=d_v, qk_total=qk_total, mxu_dtype=mxu_dtype)

    return pl.pallas_call(
        kernel,
        out_shape=(jax.ShapeDtypeStruct((B, Nq, v_total), qp.dtype),
                   jax.ShapeDtypeStruct((B, num_heads, Nq, Nkv), jnp.float32)),
        grid=grid,
        in_specs=[
            pl.BlockSpec((None, tq, qk_total), lambda b, i: (b, i, 0)),
            pl.BlockSpec((None, Nkv, kv_total), lambda b, i: (b, 0, 0)),
        ],
        out_specs=(
            pl.BlockSpec((None, tq, v_total), lambda b, i: (b, i, 0)),
            pl.BlockSpec((None, num_heads, tq, Nkv), lambda b, i: (b, 0, i, 0)),
        ),
        scratch_shapes=[pltpu.VMEM((tq, v_total), jnp.float32)],
        compiler_params=pltpu.CompilerParams(
            dimension_semantics=("parallel", "parallel"),
            vmem_limit_bytes=_VMEM_LIMIT),
    )(qp, kvp)


def pallas_multi_head_attend(qp, kvp, *, num_heads, d_qk, d_v,
                             return_weights=False):
    """qp: (B, Nq, H*Dqk) (pre-scaled); kvp: (B, Nkv, H*Dqk + H*Dv).

    Fast path (default): flash-style Nkv tiling, no O(Nq*Nkv) weights write.
    return_weights=True: also returns f32 attn_weights (B, H, Nq, Nkv)."""
    if return_weights:
        attn, w = _weights_attend(qp, kvp, num_heads=num_heads, d_qk=d_qk,
                                  d_v=d_v, mxu_dtype=qp.dtype)
        return attn, w
    attn = _flash_attend(qp, kvp, num_heads=num_heads, d_qk=d_qk, d_v=d_v,
                         mxu_dtype=qp.dtype)
    return attn, None


# ----------------------------------------------------------------------------
# MultiHeadAttention module (forward only), parameters init'd in-script
# ----------------------------------------------------------------------------
class MultiHeadAttention:
    def __init__(self, q_inputs, kv_inputs, qk_outputs=None, v_outputs=None,
                 attn_outputs=None, num_heads=8, dropout=0.0, *, key,
                 mxu_dtype=None):
        if qk_outputs is None:
            qk_outputs = q_inputs
        if v_outputs is None:
            v_outputs = qk_outputs
        if attn_outputs is None:
            attn_outputs = v_outputs
        assert qk_outputs % num_heads == 0
        assert v_outputs % num_heads == 0
        self.H = num_heads
        self.dropout = dropout          # TODO(synk): dropout not implemented
        self.D_qk = qk_outputs // num_heads
        self.D_v = v_outputs // num_heads
        self.qk_outputs = qk_outputs
        self.v_outputs = v_outputs
        self.mxu_dtype = mxu_dtype      # None -> use activation dtype on MXU

        # torch.nn.Linear default init: U(-1/sqrt(fan_in), 1/sqrt(fan_in)).
        def linear_init(k, fan_out, fan_in):
            kw, kb = jax.random.split(k)
            bound = 1.0 / math.sqrt(fan_in)
            w = jax.random.uniform(kw, (fan_out, fan_in), jnp.float32,
                                   -bound, bound)
            b = jax.random.uniform(kb, (fan_out,), jnp.float32, -bound, bound)
            # Stored (Din, Dout): no per-call weight.T.
            return w.T, b.reshape(1, fan_out)

        k1, k2, k3, k4 = jax.random.split(key, 4)
        wq, bq = linear_init(k1, qk_outputs, q_inputs)
        # Fold the 1/sqrt(D_qk) softmax scale into W_q / b_q (zero runtime cost).
        scale = 1.0 / math.sqrt(self.D_qk)
        self.Wq, self.bq = wq * scale, bq * scale
        wk, bk = linear_init(k2, qk_outputs, kv_inputs)
        wv, bv = linear_init(k3, v_outputs, kv_inputs)
        # Fused K|V projection: one matmul reads kv from HBM once.
        self.Wkv = jnp.concatenate([wk, wv], axis=1)     # (kv_in, qk+v)
        self.bkv = jnp.concatenate([bk, bv], axis=1)     # (1, qk+v)
        self.Wo, self.bo = linear_init(k4, attn_outputs, v_outputs)

    def __call__(self, q, kv, *, mask=None, return_weights=True):
        assert mask is None  # TODO(synk): mask / wipe_attn path not implemented
        B, N_q, _ = q.shape
        _, N_kv, _ = kv.shape
        mxu = self.mxu_dtype if self.mxu_dtype is not None else q.dtype

        # Projections (tiled Pallas matmuls); activations stay channel-packed.
        qp = pallas_linear(q.reshape(B * N_q, -1), self.Wq, self.bq,
                           mxu_dtype=mxu)
        qp = qp.reshape(B, N_q, self.qk_outputs)
        kvp = pallas_linear(kv.reshape(B * N_kv, -1), self.Wkv, self.bkv,
                            mxu_dtype=mxu)
        kvp = kvp.reshape(B, N_kv, self.qk_outputs + self.v_outputs)

        # Attention: no (B,N,H,D)<->(B,H,N,D) transposes; heads in-kernel.
        attn, attn_weights = pallas_multi_head_attend(
            qp, kvp, num_heads=self.H, d_qk=self.D_qk, d_v=self.D_v,
            return_weights=return_weights)

        # attn is already (B, Nq, H*Dv) -> feeds W_o with a contiguous reshape.
        attn = pallas_linear(attn.reshape(B * N_q, self.v_outputs),
                             self.Wo, self.bo,
                             mxu_dtype=mxu).reshape(B, N_q, -1)
        return attn, attn_weights


# ----------------------------------------------------------------------------
# Pure-JAX reference (correctness check of the Pallas path)
# ----------------------------------------------------------------------------
def _reference_forward(mha, q, kv):
    B, N_q, _ = q.shape
    _, N_kv, _ = kv.shape
    H, Dqk, Dv = mha.H, mha.D_qk, mha.D_v
    qk_total = mha.qk_outputs

    # mha.Wq / mha.bq already carry the 1/sqrt(D_qk) scale, so no explicit
    # division here -- mathematically identical to the PyTorch module.
    qp = (q @ mha.Wq + mha.bq).reshape(B, N_q, H, Dqk)
    kvp = kv @ mha.Wkv + mha.bkv
    kp = kvp[..., :qk_total].reshape(B, N_kv, H, Dqk)
    vp = kvp[..., qk_total:].reshape(B, N_kv, H, Dv)

    s = jnp.einsum('bqhd,bkhd->bhqk', qp, kp)
    w = jax.nn.softmax(s, axis=-1)
    a = jnp.einsum('bhqk,bkhd->bqhd', w, vp).reshape(B, N_q, H * Dv)
    a = a @ mha.Wo + mha.bo
    return a, w


if __name__ == "__main__":
    key = jax.random.PRNGKey(0)
    k_param, k_q, k_kv = jax.random.split(key, 3)

    B, N_q, N_kv = 2, 8, 8
    q_inputs = kv_inputs = 32
    num_heads = 4

    mha = MultiHeadAttention(q_inputs, kv_inputs, num_heads=num_heads,
                             key=k_param)

    q = jax.random.normal(k_q, (B, N_q, q_inputs), jnp.float32)
    kv = jax.random.normal(k_kv, (B, N_kv, kv_inputs), jnp.float32)

    ref_attn, ref_w = _reference_forward(mha, q, kv)

    # Weights-returning path (matches the PyTorch module's return signature).
    attn, attn_weights = mha(q, kv)
    attn = jax.block_until_ready(attn)
    attn_weights = jax.block_until_ready(attn_weights)
    assert attn.shape == (B, N_q, q_inputs)
    assert attn_weights.shape == (B, num_heads, N_q, N_kv)
    assert jnp.allclose(attn, ref_attn, atol=5e-3, rtol=5e-3)
    assert jnp.allclose(attn_weights, ref_w, atol=5e-3, rtol=5e-3)

    # Fast path: flash-style Nkv tiling, no O(Nq*Nkv) weights writeback.
    attn_fast, w_none = mha(q, kv, return_weights=False)
    attn_fast = jax.block_until_ready(attn_fast)
    assert w_none is None
    # approx reciprocal in the flash softmax -> slightly looser tolerance.
    assert jnp.allclose(attn_fast, ref_attn, atol=5e-3, rtol=5e-3)

    # bf16 MXU-operand path (v5e/v6e/v7x fast matmul): operands rounded to
    # bf16, accumulation stays f32.
    mha_bf16 = MultiHeadAttention(q_inputs, kv_inputs, num_heads=num_heads,
                                  key=k_param, mxu_dtype=jnp.bfloat16)
    attn_bf16, _ = mha_bf16(q, kv, return_weights=False)
    attn_bf16 = jax.block_until_ready(attn_bf16)
    assert attn_bf16.shape == (B, N_q, q_inputs)
    assert jnp.allclose(attn_bf16, ref_attn, atol=5e-2, rtol=5e-2)

    print("KERNEL_OK")
</pallas_src>

<mosaic_0001>
module attributes {stable_mosaic.version = 11 : i64} {
  func.func @_linear_kernel_inplace(%arg0: i32, %arg1: i32, %arg2: i32, %arg3: memref<16x32xf32, #tpu.memory_space<vmem>>, %arg4: memref<32x32xf32, #tpu.memory_space<vmem>>, %arg5: memref<1x32xf32, #tpu.memory_space<vmem>>, %arg6: memref<16x32xf32, #tpu.memory_space<vmem>>) attributes {dimension_semantics = [#tpu.dimension_semantics<parallel>, #tpu.dimension_semantics<parallel>, #tpu.dimension_semantics<arbitrary>], iteration_bounds = array<i64: 1, 1, 1>, scalar_prefetch = 0 : i64, scratch_operands = 0 : i64, tpu.core_type = #tpu.core_type<tc>, window_params = [{transform_indices = @transform_0, window_bounds = array<i64: 16, 32>}, {transform_indices = @transform_1, window_bounds = array<i64: 32, 32>}, {transform_indices = @transform_2, window_bounds = array<i64: 1, 32>}, {transform_indices = @transform_3, window_bounds = array<i64: 16, 32>}]} {
    %c0_i32 = arith.constant 0 : i32
    %0 = arith.cmpi eq, %arg2, %c0_i32 : i32
    %1 = arith.extui %0 : i1 to i32
    %c0_i32_0 = arith.constant 0 : i32
    %2 = arith.cmpi ne, %1, %c0_i32_0 : i32
    scf.if %2 {
      %c0_8 = arith.constant 0 : index
      %c0_9 = arith.constant 0 : index
      %9 = vector.load %arg5[%c0_8, %c0_9] : memref<1x32xf32, #tpu.memory_space<vmem>>, vector<1x32xf32>
      %10 = vector.shape_cast %9 : vector<1x32xf32> to vector<1x32xf32>
      %11 = vector.broadcast %10 : vector<1x32xf32> to vector<16x32xf32>
      %c0_10 = arith.constant 0 : index
      %c0_11 = arith.constant 0 : index
      %12 = vector.load %arg6[%c0_10, %c0_11] : memref<16x32xf32, #tpu.memory_space<vmem>>, vector<16x32xf32>
      tpu.vector_store %arg6[%c0_10, %c0_11], %11 {strides = array<i32>} : memref<16x32xf32, #tpu.memory_space<vmem>>, vector<16x32xf32>,
    } else {
    }
    %c0 = arith.constant 0 : index
    %c0_1 = arith.constant 0 : index
    %3 = vector.load %arg6[%c0, %c0_1] : memref<16x32xf32, #tpu.memory_space<vmem>>, vector<16x32xf32>
    %c0_2 = arith.constant 0 : index
    %c0_3 = arith.constant 0 : index
    %4 = vector.load %arg3[%c0_2, %c0_3] : memref<16x32xf32, #tpu.memory_space<vmem>>, vector<16x32xf32>
    %c0_4 = arith.constant 0 : index
    %c0_5 = arith.constant 0 : index
    %5 = vector.load %arg4[%c0_4, %c0_5] : memref<32x32xf32, #tpu.memory_space<vmem>>, vector<32x32xf32>
    %cst = arith.constant dense<0.000000e+00> : vector<16x32xf32>
    %6 = tpu.matmul %4, %5, %cst {dimension_numbers = #tpu.dot_dimension_numbers<[1], [0], [0], [1], [0, 0, 1, 1], [], []>} : vector<16x32xf32>, vector<32x32xf32>, vector<16x32xf32> -> vector<16x32xf32>
    %7 = arith.addf %3, %6 : vector<16x32xf32>
    %c0_6 = arith.constant 0 : index
    %c0_7 = arith.constant 0 : index
    %8 = vector.load %arg6[%c0_6, %c0_7] : memref<16x32xf32, #tpu.memory_space<vmem>>, vector<16x32xf32>
    tpu.vector_store %arg6[%c0_6, %c0_7], %7 {strides = array<i32>} : memref<16x32xf32, #tpu.memory_space<vmem>>, vector<16x32xf32>,
    return
  }
  func.func @transform_0(%arg0: i32, %arg1: i32, %arg2: i32) -> (i32, i32) {
    %c0_i32 = arith.constant 0 : i32
    return %arg0, %arg2 : i32, i32
  }
  func.func @transform_1(%arg0: i32, %arg1: i32, %arg2: i32) -> (i32, i32) {
    %c0_i32 = arith.constant 0 : i32
    return %arg2, %arg1 : i32, i32
  }
  func.func @transform_2(%arg0: i32, %arg1: i32, %arg2: i32) -> (i32, i32) {
    %c0_i32 = arith.constant 0 : i32
    %c0_i32_0 = arith.constant 0 : i32
    return %c0_i32, %arg1 : i32, i32
  }
  func.func @transform_3(%arg0: i32, %arg1: i32, %arg2: i32) -> (i32, i32) {
    %c0_i32 = arith.constant 0 : i32
    return %arg0, %arg1 : i32, i32
  }
}

</mosaic_0001>

<llo_original>
// kernel: tpu_custom_call.1
$region0: #{tpu_custom_call.1}
  #allocation0 [shape = 'u32[]', space=smem, size = 0x4, offset = 0x4, fixed_abs, tag = 'smem constant byte address 0x4 - core index']
  #allocation1 [shape = 'u32[144,128]{1,0:T(1,128)}', space=vmem, size = 0x12000, scoped, tag = 'internal scratch']
  %s0 = inlined_call_operand.hbm [shape: f32[16,32], index: 0, kind: input, shape index: {}]
  %s1 = inlined_call_operand.hbm [shape: f32[32,32], index: 1, kind: input, shape index: {}]
  %s2 = inlined_call_operand.vmem [shape: f32[1,32], index: 2, kind: input, shape index: {}]
  %s3 = inlined_call_operand.hbm [shape: f32[16,32], index: 3, kind: output, shape index: {}]
  %s4 = sld [smem:[#allocation0]]
  $region34: #{tpu_custom_call.1} parent=0
    _
  %s6 = ssub.s32 1, %s4
  %s7 = scalar_select 0, %s6, %s4
  $region1: #{tpu_custom_call.1} parent=0
    #allocation2 [shape = 'u8[8192]{0}', space=vmem, size = 0x2000, scoped, tag = 'input window, operand 0, single buffered']
    #allocation3 [shape = 's32[1]{0}', space=sflag, size = 0x4, scoped, tag = 'scoped memory for tpu_custom_call.1']
    #allocation4 [shape = 's32[1]{0}', space=sflag, size = 0x4, scoped, tag = 'scoped memory for tpu_custom_call.1']
    #allocation5 [shape = 'u8[16384]{0}', space=vmem, size = 0x4000, scoped, tag = 'input window, operand 1, single buffered']
    #allocation6 [shape = 's32[1]{0}', space=sflag, size = 0x4, scoped, tag = 'scoped memory for tpu_custom_call.1']
    #allocation7 [shape = 'u8[8192]{0}', space=vmem, size = 0x2000, scoped, tag = 'output window, operand 0, single buffered']
    %8 = vsyncpa [#allocation3], 0
    %9 = vsyncpa [#allocation6], 0
    %10 = vsyncpa [#allocation4], 0
    // Predicated region
    $region2: #{tpu_custom_call.1} parent=1 // pred_check
      _
    $region3: #{tpu_custom_call.1} parent=1 // pred_check_branch
      %12 = sbr.rel (0) target = $region5
    $region4: #{tpu_custom_call.1} parent=1 // pred_region
      %s14 = ssub.s32 256, 256
      %15 = vsyncadd [#allocation3], %s14
      %s16 = sshll.u32 [#allocation2], 4
      %s17 = int_to_ptr.vmem [resolvable:$true] %s16
      %22 = dma.hbm_to_vmem [thread:$0]  %s0, 256, %s17, [#allocation3], 128, 128, 8
    $region5: #{tpu_custom_call.1} parent=1 // pred_fallthru
      _
    // Predicated region
    $region6: #{tpu_custom_call.1} parent=1 // pred_check
      _
    $region7: #{tpu_custom_call.1} parent=1 // pred_check_branch
      %24 = sbr.rel (0) target = $region9
    $region8: #{tpu_custom_call.1} parent=1 // pred_region
      %s26 = ssub.s32 512, 512
      %27 = vsyncadd [#allocation6], %s26
      %s28 = sshll.u32 [#allocation5], 4
      %s29 = int_to_ptr.vmem [resolvable:$true] %s28
      %34 = dma.hbm_to_vmem [thread:$0]  %s1, 512, %s29, [#allocation6], 128, 128, 8
    $region9: #{tpu_custom_call.1} parent=1 // pred_fallthru
      _
    // Predicated region
    $region10: #{tpu_custom_call.1} parent=1 // pred_check
      _
    $region11: #{tpu_custom_call.1} parent=1 // pred_check_branch
      %36 = sbr.rel (0) target = $region13
    $region12: #{tpu_custom_call.1} parent=1 // pred_region
      _
    $region13: #{tpu_custom_call.1} parent=1 // pred_fallthru
      _
    // Predicated region
    $region14: #{tpu_custom_call.1} parent=1 // pred_check
      _
    $region15: #{tpu_custom_call.1} parent=1 // pred_check_branch
      %38 = sbr.rel (0) target = $region17
    $region16: #{tpu_custom_call.1} parent=1 // pred_region
      %39 = dma.done [#allocation3], 256
    $region17: #{tpu_custom_call.1} parent=1 // pred_fallthru
      _
    // Predicated region
    $region18: #{tpu_custom_call.1} parent=1 // pred_check
      _
    $region19: #{tpu_custom_call.1} parent=1 // pred_check_branch
      %41 = sbr.rel (0) target = $region21
    $region20: #{tpu_custom_call.1} parent=1 // pred_region
      %42 = dma.done [#allocation6], 512
    $region21: #{tpu_custom_call.1} parent=1 // pred_fallthru
      _
    %p43 = scmp.eq.s32.totalorder 0, 0
    // Predicated region
    $region22: #{tpu_custom_call.1} parent=1 // pred_check
      %p44 = pneg %p43
    $region23: #{tpu_custom_call.1} parent=1 // pred_check_branch
      %46 = sbr.rel (%p44) target = $region25
    $region24: #{tpu_custom_call.1} parent=1 // pred_region
      %v47 = vld [vmem:[%s2] sm:$0x1]
      %v49 = vlaneseq
      %v50 = vshrl.u32 %v49, 7
      %v51 = vsub.s32 0, %v50
      %v52 = vrot.slane %v47, %v51
      %vm54 = vcmask 261120
      %55 = vst.msk [vmem:[#allocation7] sm:$0xff] %vm54, %v52
      %56 = vst.msk [vmem:[#allocation7 + $0x8] sm:$0xff] %vm54, %v52
    $region25: #{tpu_custom_call.1} parent=1 // pred_fallthru
      _
    %v57 = vld [vmem:[#allocation7] sm:$0xff]
    %v58 = vld [vmem:[#allocation7 + $0x8] sm:$0xff]
    %v59 = vld [vmem:[#allocation2] sm:$0xff]
    %v60 = vld [vmem:[#allocation2 + $0x8] sm:$0xff]
    %v61 = vld [vmem:[#allocation5] sm:$0xff]
    %v62 = vld [vmem:[#allocation5 + $0x8] sm:$0xff]
    %v63 = vld [vmem:[#allocation5 + $0x10] sm:$0xff]
    %v64 = vld [vmem:[#allocation5 + $0x18] sm:$0xff]
    %vm65 = vcmask 261120
    %v67 = vsel %vm65, %v59, 0
    %v70 = vsel %vm65, %v60, 0
    %72 = vmatprep.subr.mxu0 0.0
    %73 = vmatpush1.msra.mxu0 %v61
    %74 = vmatprep.subr.mxu0 0.0
    %75 = vmatpush1.msra.mxu0 %v62
    %76 = vmatprep.subr.mxu0 0.0
    %77 = vmatpush1.msra.mxu0 %v63
    %78 = vmatprep.subr.mxu0 0.0
    %79 = vmatpush1.msra.mxu0 %v64
    %80 = vmatprep.subr.mxu0 0.0
    %81 = vmatpush1.msra.mxu0 0.0
    %82 = vmatprep.subr.mxu0 0.0
    %83 = vmatpush1.msra.mxu0 0.0
    %84 = vmatprep.subr.mxu0 0.0
    %85 = vmatpush1.msra.mxu0 0.0
    %86 = vmatprep.subr.mxu0 0.0
    %87 = vmatpush1.msra.mxu0 0.0
    %88 = vmatprep.subr.mxu0 0.0
    %89 = vmatpush1.msra.mxu0 0.0
    %90 = vmatprep.subr.mxu0 0.0
    %91 = vmatpush1.msra.mxu0 0.0
    %92 = vmatprep.subr.mxu0 0.0
    %93 = vmatpush1.msra.mxu0 0.0
    %94 = vmatprep.subr.mxu0 0.0
    %95 = vmatpush1.msra.mxu0 0.0
    %96 = vmatprep.subr.mxu0 0.0
    %97 = vmatpush1.msra.mxu0 0.0
    %98 = vmatprep.subr.mxu0 0.0
    %99 = vmatpush1.msra.mxu0 0.0
    %100 = vmatprep.subr.mxu0 0.0
    %101 = vmatpush1.msra.mxu0 0.0
    %102 = vmatprep.subr.mxu0 0.0
    %103 = vmatpush1.msra.mxu0 0.0
    %104 = vmatprep.subr.mxu0 0.0
    %105 = vmatpush1.msra.mxu0 0.0
    %106 = vmatprep.subr.mxu0 0.0
    %107 = vmatpush1.msra.mxu0 0.0
    %108 = vmatprep.subr.mxu0 0.0
    %109 = vmatpush1.msra.mxu0 0.0
    %110 = vmatprep.subr.mxu0 0.0
    %111 = vmatpush1.msra.mxu0 0.0
    %112 = vmatprep.subr.mxu0 0.0
    %113 = vmatpush1.msra.mxu0 0.0
    %114 = vmatprep.subr.mxu0 0.0
    %115 = vmatpush1.msra.mxu0 0.0
    %116 = vmatprep.subr.mxu0 0.0
    %117 = vmatpush1.msra.mxu0 0.0
    %118 = vmatprep.subr.mxu0 0.0
    %119 = vmatpush1.msra.mxu0 0.0
    %120 = vmatprep.subr.mxu0 0.0
    %121 = vmatpush1.msra.mxu0 0.0
    %122 = vmatprep.subr.mxu0 0.0
    %123 = vmatpush1.msra.mxu0 0.0
    %124 = vmatprep.subr.mxu0 0.0
    %125 = vmatpush1.msra.mxu0 0.0
    %126 = vmatprep.subr.mxu0 0.0
    %127 = vmatpush1.msra.mxu0 0.0
    %128 = vmatprep.subr.mxu0 0.0
    %129 = vmatpush1.msra.mxu0 0.0
    %130 = vmatprep.subr.mxu0 0.0
    %131 = vmatpush1.msra.mxu0 0.0
    %132 = vmatprep.subr.mxu0 0.0
    %133 = vmatpush1.msra.mxu0 0.0
    %134 = vmatprep.subr.mxu0 0.0
    %135 = vmatpush1.msra.mxu0 0.0
    %136 = vmatprep.mubr.f32.mxu0 0.0
    %137 = vmatmul.mubr.f32.gmra.mrb[0].mxu0 %v67
    %v138 = vpop.f32.mrb[0].mxu0
    %v139 = vadd.f32 0.0, %v138
    %v140 = vpop.f32.mrb[0].mxu0
    %141 = vmatprep.mubr.f32.mxu0 0.0
    %142 = vmatmul.mubr.f32.gmra.mrb[0].mxu0 %v70
    %v143 = vpop.f32.mrb[0].mxu0
    %v144 = vadd.f32 0.0, %v143
    %v145 = vpop.f32.mrb[0].mxu0
    %146 = vdwg.mxu0
    %v147 = vadd.f32 %v57, %v139
    %v148 = vadd.f32 %v58, %v144
    %149 = vst.msk [vmem:[#allocation7] sm:$0xff] %vm65, %v147
    %150 = vst.msk [vmem:[#allocation7 + $0x8] sm:$0xff] %vm65, %v148
    // Predicated region
    $region26: #{tpu_custom_call.1} parent=1 // pred_check
      _
    $region27: #{tpu_custom_call.1} parent=1 // pred_check_branch
      %152 = sbr.rel (0) target = $region29
    $region28: #{tpu_custom_call.1} parent=1 // pred_region
      %s154 = ssub.s32 256, 256
      %155 = vsyncadd [#allocation4], %s154
      %s156 = sshll.u32 [#allocation7], 4
      %s157 = int_to_ptr.vmem [resolvable:$true] %s156
      %162 = dma.vmem_to_hbm [thread:$0]  %s157, 256, %s3, [#allocation4], 128, 128, 8
    $region29: #{tpu_custom_call.1} parent=1 // pred_fallthru
      _
    // Predicated region
    $region30: #{tpu_custom_call.1} parent=1 // pred_check
      _
    $region31: #{tpu_custom_call.1} parent=1 // pred_check_branch
      %164 = sbr.rel (0) target = $region33
    $region32: #{tpu_custom_call.1} parent=1 // pred_region
      %165 = dma.done [#allocation4], 256
    $region33: #{tpu_custom_call.1} parent=1 // pred_fallthru
      _
    %166 = vsyncpa [#allocation3], 1
    %167 = vsyncpa [#allocation6], 1
    %168 = vsyncpa [#allocation4], 1

</llo_original>
